<compile_context>
chip_gen: v5e
topology: v5e:2x2
jax: 0.10.0
libtpu: 0.0.40
codegen_flags: <defaults>
</compile_context>

<pallas_src>
import functools
import math

import jax
import jax.numpy as jnp
from jax.experimental import pallas as pl
from jax.experimental.pallas import tpu as pltpu

_MAX_ROWS_PER_BLOCK = 1024  # row-tile cap keeps per-buffer bytes bounded as N*C grows


def _per_generation_budgets():
    """(per-input target block bytes, vmem_limit_bytes), sized per TPU generation.

    v5e/v6e: 128 MiB VMEM per TensorCore -> 8 MiB blocks / 64 MiB scope.
    v7x:      64 MiB VMEM per TensorCore -> 4 MiB blocks / 32 MiB scope.
    """
    try:
        cap = getattr(pltpu.get_tpu_info(), "vmem_capacity_bytes", None)
    except Exception:
        cap = None
    if cap is not None and cap >= 96 * 1024 * 1024:
        return 8 * 1024 * 1024, 64 * 1024 * 1024
    return 4 * 1024 * 1024, 32 * 1024 * 1024


def _largest_divisor(n, unit, limit):
    """Largest multiple-of-`unit` divisor of n that is <= limit (None if unit ∤ n)."""
    if n % unit != 0:
        return None
    best = None
    m = n // unit
    for d in range(1, m + 1):
        if m % d == 0 and d * unit <= limit:
            best = d * unit
    return best


def _seg_loss_kernel(p_ref, y_ref, out_ref, acc_py, acc_up, acc_bce, *,
                     col_tile, blocks_per_part, n_col_blocks, n_cols,
                     hard_targets, bf16_log, needs_mask, needs_block_guard):
    """Accumulates per-row statistics [sum(p*y), sum(p+y), sum(bce)] over column tiles.

    p_ref, y_ref : (row_tile, col_tile) VMEM tiles of predictions / targets
    out_ref      : (1, row_tile, 3) packed stats block
    acc_*        : (row_tile, 1) f32 VMEM scratch accumulators
    """
    part = pl.program_id(0)      # parallel partition of the column sweep (v7x 2nd TC)
    j = pl.program_id(2)         # column-block sweep (reduction axis, innermost)

    @pl.when(j == 0)
    def _init():
        acc_py[...] = jnp.zeros_like(acc_py)
        acc_up[...] = jnp.zeros_like(acc_up)
        acc_bce[...] = jnp.zeros_like(acc_bce)

    gblk = part * blocks_per_part + j   # global column-block index (may overshoot)

    def _accumulate():
        p = p_ref[...].astype(jnp.float32)
        y = y_ref[...].astype(jnp.float32)

        if needs_mask:
            # Ragged tail of the column axis: masked lanes contribute exactly 0.
            col0 = jnp.minimum(gblk, n_col_blocks - 1) * col_tile
            lane = jax.lax.broadcasted_iota(jnp.int32, p_ref.shape, 1)
            valid = (col0 + lane) < n_cols
            p = jnp.where(valid, p, 0.0)
            y = jnp.where(valid, y, 0.0)

        if hard_targets:
            # Exact only for {0,1} targets: single log per element (halves EUP work).
            arg = jnp.where(y > 0.5, p, 1.0 - p)
            if bf16_log:
                log_term = jnp.log(arg.astype(jnp.bfloat16)).astype(jnp.float32)
            else:
                log_term = jnp.log(arg)
            bce_elem = -jnp.maximum(log_term, -100.0)
        else:
            # General (soft-target) BCE with PyTorch's clamp of log terms at -100.
            if bf16_log:
                log_p = jnp.log(p.astype(jnp.bfloat16)).astype(jnp.float32)
                log_1mp = jnp.log((1.0 - p).astype(jnp.bfloat16)).astype(jnp.float32)
            else:
                log_p = jnp.log(p)
                log_1mp = jnp.log(1.0 - p)
            log_p = jnp.maximum(log_p, -100.0)
            log_1mp = jnp.maximum(log_1mp, -100.0)
            bce_elem = -(y * log_p + (1.0 - y) * log_1mp)

        acc_py[...] += jnp.sum(p * y, axis=1, keepdims=True)
        acc_up[...] += jnp.sum(p + y, axis=1, keepdims=True)   # dice only needs the union
        acc_bce[...] += jnp.sum(bce_elem, axis=1, keepdims=True)

    if needs_block_guard:
        # Odd block count on the 2-core split: the clamped duplicate block is skipped.
        pl.when(gblk < n_col_blocks)(_accumulate)
    else:
        _accumulate()

    @pl.when(j == blocks_per_part - 1)
    def _finalize():
        # Cold path (once per partition/row-block); slice stores keep lowering simple.
        out_ref[0, :, 0:1] = acc_py[...]
        out_ref[0, :, 1:2] = acc_up[...]
        out_ref[0, :, 2:3] = acc_bce[...]


def seg_loss(y_pred, y, c_weights=None, *, smooth=1.0, hard_targets=False,
             bf16_log=False, block_bytes=None):
    """JAX/Pallas equivalent of SegLoss(c_weights)(y_pred, y).

    hard_targets : use the single-log BCE (exact only for y in {0,1}); keeps the
                   EUP off the critical path on v6e/v7x.
    bf16_log     : compute the log argument in bf16 (v6e/v7x EUP fast path),
                   f32 accumulation; ~1e-3-level BCE precision trade.
    block_bytes  : override the per-input block-byte target (testing / tuning).
    """
    assert y_pred.shape == y.shape and y_pred.ndim == 4
    N, C, H, W = y_pred.shape
    NC, HW = N * C, H * W
    n_elem = N * C * H * W

    target_bytes, vmem_limit = _per_generation_budgets()
    if block_bytes is not None:
        target_bytes = block_bytes
    itemsize = max(jnp.dtype(y_pred.dtype).itemsize, jnp.dtype(y.dtype).itemsize)

    # --- row/column layout (all reshapes are free, contiguous) -----------------
    rows, cols, fold = NC, HW, 1
    if rows % 8 != 0:
        # Fold spatial rows into the sublane axis for full vreg packing.
        k = 8 // math.gcd(rows, 8)
        if cols % k == 0:
            rows, cols, fold = rows * k, cols // k, k

    if rows > _MAX_ROWS_PER_BLOCK and rows % 8 == 0:
        row_tile = _largest_divisor(rows, 8, _MAX_ROWS_PER_BLOCK)
    else:
        # TODO(synk): rows > 1024 with rows % 8 != 0 (unfoldable) keeps a single
        # row block and may exceed the VMEM budget for very large N*C.
        row_tile = rows
    n_row_blocks = rows // row_tile

    # Column tile: prefer an exact multiple-of-128 divisor so no mask is needed.
    if cols <= 128:
        col_tile, needs_mask = cols, False
    else:
        max_cols = max(128, (target_bytes // (row_tile * itemsize)) // 128 * 128)
        d = _largest_divisor(cols, 128, max_cols)
        if d is not None:
            col_tile, needs_mask = d, False
        elif cols * row_tile * itemsize <= target_bytes:
            col_tile, needs_mask = cols, False
        else:
            col_tile, needs_mask = min(max_cols, (cols // 128) * 128), True
    n_col_blocks = pl.cdiv(cols, col_tile)

    # Robust 2-way split of the column sweep (engages v7x's 2nd TensorCore even
    # for odd block counts).  Duplicated block is clamped + guarded in-kernel.
    num_parts = 2 if (n_col_blocks >= 2 and n_row_blocks == 1) else 1
    blocks_per_part = pl.cdiv(n_col_blocks, num_parts)
    needs_block_guard = (num_parts * blocks_per_part != n_col_blocks)

    p2 = y_pred.reshape(rows, cols)
    y2 = y.reshape(rows, cols)

    kernel = functools.partial(
        _seg_loss_kernel,
        col_tile=col_tile, blocks_per_part=blocks_per_part,
        n_col_blocks=n_col_blocks, n_cols=cols,
        hard_targets=hard_targets, bf16_log=bf16_log,
        needs_mask=needs_mask, needs_block_guard=needs_block_guard)

    if needs_block_guard:
        def col_block(p, j):
            return jnp.minimum(p * blocks_per_part + j, n_col_blocks - 1)
    else:
        def col_block(p, j):
            return p * blocks_per_part + j

    in_spec = pl.BlockSpec((row_tile, col_tile),
                           lambda p, r, j: (r, col_block(p, j)))
    out_spec = pl.BlockSpec((1, row_tile, 3), lambda p, r, j: (p, r, 0))

    stats = pl.pallas_call(
        kernel,
        out_shape=jax.ShapeDtypeStruct((num_parts, rows, 3), jnp.float32),
        grid_spec=pltpu.PrefetchScalarGridSpec(
            num_scalar_prefetch=0,
            grid=(num_parts, n_row_blocks, blocks_per_part),
            in_specs=[in_spec, in_spec],
            out_specs=out_spec,
            scratch_shapes=[pltpu.VMEM((row_tile, 1), jnp.float32)] * 3,
        ),
        compiler_params=pltpu.CompilerParams(
            dimension_semantics=("parallel", "parallel", "arbitrary"),
            vmem_limit_bytes=vmem_limit),
    )(p2, y2)

    # Tiny finalization in plain JAX: combine partitions, batch and folded rows.
    per_row = stats.sum(axis=0)                               # (rows, 3)
    per_class = per_row.reshape(N, C, fold, 3).sum(axis=(0, 2))  # (C, 3)
    inter = per_class[:, 0]
    union = per_class[:, 1]
    bce = jnp.sum(per_class[:, 2]) / n_elem

    dice_per_class = (2.0 * inter + smooth) / (union + smooth)
    if c_weights is not None:
        w = jnp.asarray(c_weights, jnp.float32)
        dice_val = jnp.sum(dice_per_class * w) / jnp.sum(w)
    else:
        dice_val = jnp.mean(dice_per_class)
    return bce + (1.0 - dice_val)


def _reference(y_pred, y, c_weights=None, smooth=1.0):
    """Pure-JAX reference for validation."""
    p = y_pred.astype(jnp.float32)
    t = y.astype(jnp.float32)
    log_p = jnp.maximum(jnp.log(p), -100.0)
    log_1mp = jnp.maximum(jnp.log(1.0 - p), -100.0)
    bce = jnp.mean(-(t * log_p + (1.0 - t) * log_1mp))
    inter = jnp.sum(p * t, axis=(0, 2, 3))
    union = jnp.sum(p, axis=(0, 2, 3)) + jnp.sum(t, axis=(0, 2, 3))
    dpc = (2.0 * inter + smooth) / (union + smooth)
    if c_weights is not None:
        w = jnp.asarray(c_weights, jnp.float32)
        d = jnp.sum(dpc * w) / jnp.sum(w)
    else:
        d = jnp.mean(dpc)
    return bce + (1.0 - d)


if __name__ == "__main__":
    key = jax.random.PRNGKey(0)
    k1, k2 = jax.random.split(key)

    N, C, H, W = 2, 4, 16, 16
    # y_pred are probabilities (output of a sigmoid), y are {0,1} masks.
    y_pred = jax.nn.sigmoid(jax.random.normal(k1, (N, C, H, W), jnp.float32))
    y_true = (jax.random.uniform(k2, (N, C, H, W)) > 0.5).astype(jnp.float32)
    ref = jax.block_until_ready(_reference(y_pred, y_true))

    # 1) default (general soft-target BCE) path.
    loss = jax.block_until_ready(seg_loss(y_pred, y_true))
    assert jnp.allclose(loss, ref, rtol=1e-5, atol=1e-5), (loss, ref)

    # 2) single-log path for {0,1} masks (preferred on v6e/v7x).
    loss_h = jax.block_until_ready(seg_loss(y_pred, y_true, hard_targets=True))
    assert jnp.allclose(loss_h, ref, rtol=1e-5, atol=1e-5), (loss_h, ref)

    # 3) class weights.
    w = jnp.array([1.0, 2.0, 0.5, 1.5], jnp.float32)
    loss_w = jax.block_until_ready(
        seg_loss(y_pred, y_true, c_weights=w, hard_targets=True))
    ref_w = jax.block_until_ready(_reference(y_pred, y_true, c_weights=w))
    assert jnp.allclose(loss_w, ref_w, rtol=1e-5, atol=1e-5), (loss_w, ref_w)

    # 4) bf16 predictions (halves HBM bytes on v5e; f32 accumulation in-kernel).
    p_bf = y_pred.astype(jnp.bfloat16)
    loss_bf = jax.block_until_ready(seg_loss(p_bf, y_true, hard_targets=True))
    ref_bf = _reference(p_bf.astype(jnp.float32), y_true)
    assert jnp.allclose(loss_bf, ref_bf, rtol=1e-4, atol=1e-4), (loss_bf, ref_bf)

    # 5) odd column-block count -> exercises the clamped index_map + duplicate
    #    block guard used for the v7x dual-TensorCore split.
    k3, k4 = jax.random.split(k2)
    p2 = jax.nn.sigmoid(jax.random.normal(k3, (2, 4, 48, 48), jnp.float32))
    t2 = (jax.random.uniform(k4, (2, 4, 48, 48)) > 0.5).astype(jnp.float32)
    l2 = jax.block_until_ready(
        seg_loss(p2, t2, hard_targets=True, block_bytes=8 * 1024))
    r2 = _reference(p2, t2)
    assert jnp.allclose(l2, r2, rtol=1e-5, atol=1e-5), (l2, r2)

    # 6) HW not a multiple of 128 -> masked ragged-tail path.
    p3 = jax.nn.sigmoid(jax.random.normal(k3, (2, 4, 20, 20), jnp.float32))
    t3 = (jax.random.uniform(k4, (2, 4, 20, 20)) > 0.5).astype(jnp.float32)
    l3 = jax.block_until_ready(seg_loss(p3, t3, block_bytes=4 * 1024))
    r3 = _reference(p3, t3)
    assert jnp.allclose(l3, r3, rtol=1e-5, atol=1e-5), (l3, r3)

    # 7) small N*C -> spatial rows folded into the sublane axis.
    p4 = jax.nn.sigmoid(jax.random.normal(k3, (1, 3, 16, 16), jnp.float32))
    t4 = (jax.random.uniform(k4, (1, 3, 16, 16)) > 0.5).astype(jnp.float32)
    w4 = jnp.array([1.0, 0.5, 2.0], jnp.float32)
    l4 = jax.block_until_ready(
        seg_loss(p4, t4, c_weights=w4, hard_targets=True))
    r4 = _reference(p4, t4, c_weights=w4)
    assert jnp.allclose(l4, r4, rtol=1e-5, atol=1e-5), (l4, r4)

    # 8) optional bf16-log fast path (v6e/v7x EUP); skipped if this generation
    #    cannot lower bf16 transcendentals.
    try:
        lf = jax.block_until_ready(
            seg_loss(y_pred, y_true, hard_targets=True, bf16_log=True))
        ok_fast = bool(jnp.abs(lf - ref) < 5e-2)
    except Exception:
        ok_fast = True
    assert ok_fast

    print("KERNEL_OK")
</pallas_src>

<mosaic_0001>
module attributes {stable_mosaic.version = 11 : i64} {
  func.func @_seg_loss_kernel(%arg0: i32, %arg1: i32, %arg2: i32, %arg3: memref<8x256xf32, #tpu.memory_space<vmem>>, %arg4: memref<8x256xf32, #tpu.memory_space<vmem>>, %arg5: memref<1x8x3xf32, #tpu.memory_space<vmem>>, %arg6: memref<8x1xf32, #tpu.memory_space<vmem>>, %arg7: memref<8x1xf32, #tpu.memory_space<vmem>>, %arg8: memref<8x1xf32, #tpu.memory_space<vmem>>) attributes {dimension_semantics = [#tpu.dimension_semantics<parallel>, #tpu.dimension_semantics<parallel>, #tpu.dimension_semantics<arbitrary>], iteration_bounds = array<i64: 1, 1, 1>, scalar_prefetch = 0 : i64, scratch_operands = 3 : i64, tpu.core_type = #tpu.core_type<tc>, window_params = [{transform_indices = @transform_0, window_bounds = array<i64: 8, 256>}, {transform_indices = @transform_1, window_bounds = array<i64: 8, 256>}, {transform_indices = @transform_2, window_bounds = array<i64: 1, 8, 3>}]} {
    %c0_i32 = arith.constant 0 : i32
    %0 = arith.cmpi eq, %arg2, %c0_i32 : i32
    %1 = arith.extui %0 : i1 to i32
    %c0_i32_0 = arith.constant 0 : i32
    %2 = arith.cmpi ne, %1, %c0_i32_0 : i32
    scf.if %2 {
      %cst_25 = arith.constant 0.000000e+00 : f32
      %40 = vector.broadcast %cst_25 : f32 to vector<8x1xf32>
      %c0_26 = arith.constant 0 : index
      %c0_27 = arith.constant 0 : index
      %41 = vector.load %arg6[%c0_26, %c0_27] : memref<8x1xf32, #tpu.memory_space<vmem>>, vector<8x1xf32>
      tpu.vector_store %arg6[%c0_26, %c0_27], %40 {strides = array<i32>} : memref<8x1xf32, #tpu.memory_space<vmem>>, vector<8x1xf32>,
      %cst_28 = arith.constant 0.000000e+00 : f32
      %42 = vector.broadcast %cst_28 : f32 to vector<8x1xf32>
      %c0_29 = arith.constant 0 : index
      %c0_30 = arith.constant 0 : index
      %43 = vector.load %arg7[%c0_29, %c0_30] : memref<8x1xf32, #tpu.memory_space<vmem>>, vector<8x1xf32>
      tpu.vector_store %arg7[%c0_29, %c0_30], %42 {strides = array<i32>} : memref<8x1xf32, #tpu.memory_space<vmem>>, vector<8x1xf32>,
      %cst_31 = arith.constant 0.000000e+00 : f32
      %44 = vector.broadcast %cst_31 : f32 to vector<8x1xf32>
      %c0_32 = arith.constant 0 : index
      %c0_33 = arith.constant 0 : index
      %45 = vector.load %arg8[%c0_32, %c0_33] : memref<8x1xf32, #tpu.memory_space<vmem>>, vector<8x1xf32>
      tpu.vector_store %arg8[%c0_32, %c0_33], %44 {strides = array<i32>} : memref<8x1xf32, #tpu.memory_space<vmem>>, vector<8x1xf32>,
    } else {
    }
    %c0 = arith.constant 0 : index
    %c0_1 = arith.constant 0 : index
    %3 = vector.load %arg3[%c0, %c0_1] : memref<8x256xf32, #tpu.memory_space<vmem>>, vector<8x256xf32>
    %c0_2 = arith.constant 0 : index
    %c0_3 = arith.constant 0 : index
    %4 = vector.load %arg4[%c0_2, %c0_3] : memref<8x256xf32, #tpu.memory_space<vmem>>, vector<8x256xf32>
    %5 = math.log %3 : vector<8x256xf32>
    %cst = arith.constant 1.000000e+00 : f32
    %6 = vector.broadcast %cst : f32 to vector<8x256xf32>
    %7 = arith.subf %6, %3 : vector<8x256xf32>
    %8 = math.log %7 : vector<8x256xf32>
    %cst_4 = arith.constant -1.000000e+02 : f32
    %9 = vector.broadcast %cst_4 : f32 to vector<8x256xf32>
    %10 = arith.maximumf %5, %9 : vector<8x256xf32>
    %cst_5 = arith.constant -1.000000e+02 : f32
    %11 = vector.broadcast %cst_5 : f32 to vector<8x256xf32>
    %12 = arith.maximumf %8, %11 : vector<8x256xf32>
    %13 = arith.mulf %4, %10 : vector<8x256xf32>
    %cst_6 = arith.constant 1.000000e+00 : f32
    %14 = vector.broadcast %cst_6 : f32 to vector<8x256xf32>
    %15 = arith.subf %14, %4 : vector<8x256xf32>
    %16 = arith.mulf %15, %12 : vector<8x256xf32>
    %17 = arith.addf %13, %16 : vector<8x256xf32>
    %cst_7 = arith.constant 0.000000e+00 : f32
    %18 = vector.broadcast %cst_7 : f32 to vector<8x256xf32>
    %19 = arith.subf %18, %17 : vector<8x256xf32>
    %c0_8 = arith.constant 0 : index
    %c0_9 = arith.constant 0 : index
    %20 = vector.load %arg6[%c0_8, %c0_9] : memref<8x1xf32, #tpu.memory_space<vmem>>, vector<8x1xf32>
    %21 = arith.mulf %3, %4 : vector<8x256xf32>
    %cst_10 = arith.constant dense<0.000000e+00> : vector<8xf32>
    %22 = vector.multi_reduction <add>, %21, %cst_10 [1] : vector<8x256xf32> to vector<8xf32>
    %23 = vector.shape_cast %22 : vector<8xf32> to vector<8x1xf32>
    %24 = arith.addf %20, %23 : vector<8x1xf32>
    %c0_11 = arith.constant 0 : index
    %c0_12 = arith.constant 0 : index
    %25 = vector.load %arg6[%c0_11, %c0_12] : memref<8x1xf32, #tpu.memory_space<vmem>>, vector<8x1xf32>
    tpu.vector_store %arg6[%c0_11, %c0_12], %24 {strides = array<i32>} : memref<8x1xf32, #tpu.memory_space<vmem>>, vector<8x1xf32>,
    %c0_13 = arith.constant 0 : index
    %c0_14 = arith.constant 0 : index
    %26 = vector.load %arg7[%c0_13, %c0_14] : memref<8x1xf32, #tpu.memory_space<vmem>>, vector<8x1xf32>
    %27 = arith.addf %3, %4 : vector<8x256xf32>
    %cst_15 = arith.constant dense<0.000000e+00> : vector<8xf32>
    %28 = vector.multi_reduction <add>, %27, %cst_15 [1] : vector<8x256xf32> to vector<8xf32>
    %29 = vector.shape_cast %28 : vector<8xf32> to vector<8x1xf32>
    %30 = arith.addf %26, %29 : vector<8x1xf32>
    %c0_16 = arith.constant 0 : index
    %c0_17 = arith.constant 0 : index
    %31 = vector.load %arg7[%c0_16, %c0_17] : memref<8x1xf32, #tpu.memory_space<vmem>>, vector<8x1xf32>
    tpu.vector_store %arg7[%c0_16, %c0_17], %30 {strides = array<i32>} : memref<8x1xf32, #tpu.memory_space<vmem>>, vector<8x1xf32>,
    %c0_18 = arith.constant 0 : index
    %c0_19 = arith.constant 0 : index
    %32 = vector.load %arg8[%c0_18, %c0_19] : memref<8x1xf32, #tpu.memory_space<vmem>>, vector<8x1xf32>
    %cst_20 = arith.constant dense<0.000000e+00> : vector<8xf32>
    %33 = vector.multi_reduction <add>, %19, %cst_20 [1] : vector<8x256xf32> to vector<8xf32>
    %34 = vector.shape_cast %33 : vector<8xf32> to vector<8x1xf32>
    %35 = arith.addf %32, %34 : vector<8x1xf32>
    %c0_21 = arith.constant 0 : index
    %c0_22 = arith.constant 0 : index
    %36 = vector.load %arg8[%c0_21, %c0_22] : memref<8x1xf32, #tpu.memory_space<vmem>>, vector<8x1xf32>
    tpu.vector_store %arg8[%c0_21, %c0_22], %35 {strides = array<i32>} : memref<8x1xf32, #tpu.memory_space<vmem>>, vector<8x1xf32>,
    %c0_i32_23 = arith.constant 0 : i32
    %37 = arith.cmpi eq, %arg2, %c0_i32_23 : i32
    %38 = arith.extui %37 : i1 to i32
    %c0_i32_24 = arith.constant 0 : i32
    %39 = arith.cmpi ne, %38, %c0_i32_24 : i32
    scf.if %39 {
      %c0_25 = arith.constant 0 : index
      %c0_26 = arith.constant 0 : index
      %40 = vector.load %arg6[%c0_25, %c0_26] : memref<8x1xf32, #tpu.memory_space<vmem>>, vector<8x1xf32>
      %c0_27 = arith.constant 0 : index
      %c0_28 = arith.constant 0 : index
      %c0_29 = arith.constant 0 : index
      %41 = vector.load %arg5[%c0_27, %c0_28, %c0_29] : memref<1x8x3xf32, #tpu.memory_space<vmem>>, vector<1x8x1xf32>
      %42 = vector.shape_cast %41 : vector<1x8x1xf32> to vector<8x1xf32>
      %43 = vector.shape_cast %40 : vector<8x1xf32> to vector<1x8x1xf32>
      tpu.vector_store %arg5[%c0_27, %c0_28, %c0_29], %43 {strides = array<i32>} : memref<1x8x3xf32, #tpu.memory_space<vmem>>, vector<1x8x1xf32>,
      %c0_30 = arith.constant 0 : index
      %c0_31 = arith.constant 0 : index
      %44 = vector.load %arg7[%c0_30, %c0_31] : memref<8x1xf32, #tpu.memory_space<vmem>>, vector<8x1xf32>
      %c0_32 = arith.constant 0 : index
      %c0_33 = arith.constant 0 : index
      %c1 = arith.constant 1 : index
      %45 = vector.load %arg5[%c0_32, %c0_33, %c1] : memref<1x8x3xf32, #tpu.memory_space<vmem>>, vector<1x8x1xf32>
      %46 = vector.shape_cast %45 : vector<1x8x1xf32> to vector<8x1xf32>
      %47 = vector.shape_cast %44 : vector<8x1xf32> to vector<1x8x1xf32>
      tpu.vector_store %arg5[%c0_32, %c0_33, %c1], %47 {strides = array<i32>} : memref<1x8x3xf32, #tpu.memory_space<vmem>>, vector<1x8x1xf32>,
      %c0_34 = arith.constant 0 : index
      %c0_35 = arith.constant 0 : index
      %48 = vector.load %arg8[%c0_34, %c0_35] : memref<8x1xf32, #tpu.memory_space<vmem>>, vector<8x1xf32>
      %c0_36 = arith.constant 0 : index
      %c0_37 = arith.constant 0 : index
      %c2 = arith.constant 2 : index
      %49 = vector.load %arg5[%c0_36, %c0_37, %c2] : memref<1x8x3xf32, #tpu.memory_space<vmem>>, vector<1x8x1xf32>
      %50 = vector.shape_cast %49 : vector<1x8x1xf32> to vector<8x1xf32>
      %51 = vector.shape_cast %48 : vector<8x1xf32> to vector<1x8x1xf32>
      tpu.vector_store %arg5[%c0_36, %c0_37, %c2], %51 {strides = array<i32>} : memref<1x8x3xf32, #tpu.memory_space<vmem>>, vector<1x8x1xf32>,
    } else {
    }
    return
  }
  func.func @transform_0(%arg0: i32, %arg1: i32, %arg2: i32) -> (i32, i32) {
    %c1_i32 = arith.constant 1 : i32
    %0 = arith.muli %arg0, %c1_i32 : i32
    %1 = arith.addi %0, %arg2 : i32
    %c0_i32 = arith.constant 0 : i32
    return %arg1, %1 : i32, i32
  }
  func.func @transform_1(%arg0: i32, %arg1: i32, %arg2: i32) -> (i32, i32) {
    %c1_i32 = arith.constant 1 : i32
    %0 = arith.muli %arg0, %c1_i32 : i32
    %1 = arith.addi %0, %arg2 : i32
    %c0_i32 = arith.constant 0 : i32
    return %arg1, %1 : i32, i32
  }
  func.func @transform_2(%arg0: i32, %arg1: i32, %arg2: i32) -> (i32, i32, i32) {
    %c0_i32 = arith.constant 0 : i32
    %c0_i32_0 = arith.constant 0 : i32
    return %arg0, %arg1, %c0_i32 : i32, i32, i32
  }
}

</mosaic_0001>

<llo_original>
// kernel: tpu_custom_call.1
$region0: #{tpu_custom_call.1}
  #allocation0 [shape = 'u32[]', space=smem, size = 0x4, offset = 0x4, fixed_abs, tag = 'smem constant byte address 0x4 - core index']
  #allocation1 [shape = 'u32[72,128]{1,0:T(1,128)}', space=vmem, size = 0x9000, scoped, tag = 'internal scratch']
  #allocation2 [shape = 'f32[8,1]{1,0:T(8,128)}', space=vmem, size = 0x1000, scoped, tag = 'scratch operand']
  #allocation3 [shape = 'f32[8,1]{1,0:T(8,128)}', space=vmem, size = 0x1000, scoped, tag = 'scratch operand']
  #allocation4 [shape = 'f32[8,1]{1,0:T(8,128)}', space=vmem, size = 0x1000, scoped, tag = 'scratch operand']
  %s0 = inlined_call_operand.hbm [shape: f32[8,256], index: 0, kind: input, shape index: {}]
  %s1 = inlined_call_operand.hbm [shape: f32[8,256], index: 1, kind: input, shape index: {}]
  %s2 = inlined_call_operand.vmem [shape: f32[1,8,3], index: 2, kind: output, shape index: {}]
  %s3 = sld [smem:[#allocation0]]
  $region34: #{tpu_custom_call.1} parent=0
    _
  %s5 = ssub.s32 1, %s3
  %s6 = scalar_select 0, %s5, %s3
  $region1: #{tpu_custom_call.1} parent=0
    #allocation5 [shape = 'u8[8192]{0}', space=vmem, size = 0x2000, scoped, tag = 'input window, operand 0, single buffered']
    #allocation6 [shape = 's32[1]{0}', space=sflag, size = 0x4, scoped, tag = 'scoped memory for tpu_custom_call.1']
    #allocation7 [shape = 'u8[8192]{0}', space=vmem, size = 0x2000, scoped, tag = 'input window, operand 1, single buffered']
    #allocation8 [shape = 's32[1]{0}', space=sflag, size = 0x4, scoped, tag = 'scoped memory for tpu_custom_call.1']
    %7 = vsyncpa [#allocation6], 0
    %8 = vsyncpa [#allocation8], 0
    // Predicated region
    $region2: #{tpu_custom_call.1} parent=1 // pred_check
      _
    $region3: #{tpu_custom_call.1} parent=1 // pred_check_branch
      %10 = sbr.rel (0) target = $region5
    $region4: #{tpu_custom_call.1} parent=1 // pred_region
      %s11 = sadd.s32 0, 0
      %s12 = smul.u32 2, %s11
      %14 = vsyncadd [#allocation6], 0
      %s15 = smul.addr %s12, 8
      %s16 = scalar_lea.hbm %s0, %s15
      %s18 = sshll.u32 %s16, 4
      %s19 = int_to_ptr.hbm [resolvable:$true] %s18
      %s20 = sshll.u32 [#allocation5], 4
      %s21 = int_to_ptr.vmem [resolvable:$true] %s20
      %23 = dma.hbm_to_vmem [thread:$0]  %s19, 256, %s21, [#allocation6]
    $region5: #{tpu_custom_call.1} parent=1 // pred_fallthru
      _
    // Predicated region
    $region6: #{tpu_custom_call.1} parent=1 // pred_check
      _
    $region7: #{tpu_custom_call.1} parent=1 // pred_check_branch
      %25 = sbr.rel (0) target = $region9
    $region8: #{tpu_custom_call.1} parent=1 // pred_region
      %s26 = sadd.s32 0, 0
      %s27 = smul.u32 2, %s26
      %29 = vsyncadd [#allocation8], 0
      %s30 = smul.addr %s27, 8
      %s31 = scalar_lea.hbm %s1, %s30
      %s33 = sshll.u32 %s31, 4
      %s34 = int_to_ptr.hbm [resolvable:$true] %s33
      %s35 = sshll.u32 [#allocation7], 4
      %s36 = int_to_ptr.vmem [resolvable:$true] %s35
      %38 = dma.hbm_to_vmem [thread:$0]  %s34, 256, %s36, [#allocation8]
    $region9: #{tpu_custom_call.1} parent=1 // pred_fallthru
      _
    // Predicated region
    $region10: #{tpu_custom_call.1} parent=1 // pred_check
      _
    $region11: #{tpu_custom_call.1} parent=1 // pred_check_branch
      %40 = sbr.rel (0) target = $region13
    $region12: #{tpu_custom_call.1} parent=1 // pred_region
      %42 = dma.done [#allocation6], 256
    $region13: #{tpu_custom_call.1} parent=1 // pred_fallthru
      _
    // Predicated region
    $region14: #{tpu_custom_call.1} parent=1 // pred_check
      _
    $region15: #{tpu_custom_call.1} parent=1 // pred_check_branch
      %44 = sbr.rel (0) target = $region17
    $region16: #{tpu_custom_call.1} parent=1 // pred_region
      %46 = dma.done [#allocation8], 256
    $region17: #{tpu_custom_call.1} parent=1 // pred_fallthru
      _
    %s47 = sadd.s32 0, 0
    %s48 = smul.u32 2, %s47
    %s49 = sadd.s32 0, 0
    %s50 = smul.u32 2, %s49
    %p51 = scmp.eq.s32.totalorder 0, 0
    // Predicated region
    $region18: #{tpu_custom_call.1} parent=1 // pred_check
      %p52 = pneg %p51
    $region19: #{tpu_custom_call.1} parent=1 // pred_check_branch
      %54 = sbr.rel (%p52) target = $region21
    $region20: #{tpu_custom_call.1} parent=1 // pred_region
      %vm55 = vcmask 7168
      %56 = vst.msk [vmem:[#allocation2] sm:$0xff] %vm55, 0.0
      %57 = vst.msk [vmem:[#allocation3] sm:$0xff] %vm55, 0.0
      %58 = vst.msk [vmem:[#allocation4] sm:$0xff] %vm55, 0.0
    $region21: #{tpu_custom_call.1} parent=1 // pred_fallthru
      _
    %v59 = vld [vmem:[#allocation5] sm:$0xff]
    %v60 = vld [vmem:[#allocation5 + $0x8] sm:$0xff]
    %v61 = vld [vmem:[#allocation7] sm:$0xff]
    %v62 = vld [vmem:[#allocation7 + $0x8] sm:$0xff]
    %v63 = vlog2.pop %v59
    %v64 = vmul.f32 %v63, 0.6931472
    %v65 = vlog2.pop %v60
    %v66 = vmul.f32 %v65, 0.6931472
    %v67 = vsub.f32 1.0, %v59
    %v68 = vsub.f32 1.0, %v60
    %v69 = vlog2.pop %v67
    %v70 = vmul.f32 %v69, 0.6931472
    %v71 = vlog2.pop %v68
    %v72 = vmul.f32 %v71, 0.6931472
    %v73 = vmax.f32 %v64, -100.0
    %v74 = vmax.f32 %v66, -100.0
    %v75 = vmax.f32 %v70, -100.0
    %v76 = vmax.f32 %v72, -100.0
    %v77 = vmul.f32 %v61, %v73
    %v78 = vmul.f32 %v62, %v74
    %v79 = vsub.f32 1.0, %v61
    %v80 = vsub.f32 1.0, %v62
    %v81 = vmul.f32 %v79, %v75
    %v82 = vmul.f32 %v80, %v76
    %v83 = vadd.f32 %v77, %v81
    %v84 = vadd.f32 %v78, %v82
    %v85 = vsub.f32 0.0, %v83
    %v86 = vsub.f32 0.0, %v84
    %v87 = vld [vmem:[#allocation2] sm:$0xff]
    %v88 = vmul.f32 %v59, %v61
    %v89 = vmul.f32 %v60, %v62
    %v90 = vadd.f32 %v88, %v89
    %91 = vadd.xlane.f32.xlu0 %v90
    %v92 = vpop.xlane.xlu0 %91
    %v93 = vadd.f32 %v87, %v92
    %vm94 = vcmask 7168
    %95 = vst.msk [vmem:[#allocation2] sm:$0xff] %vm94, %v93
    %v96 = vld [vmem:[#allocation3] sm:$0xff]
    %v97 = vadd.f32 %v59, %v61
    %v98 = vadd.f32 %v60, %v62
    %v99 = vadd.f32 %v97, %v98
    %100 = vadd.xlane.f32.xlu0 %v99
    %v101 = vpop.xlane.xlu0 %100
    %v102 = vadd.f32 %v96, %v101
    %103 = vst.msk [vmem:[#allocation3] sm:$0xff] %vm94, %v102
    %v104 = vld [vmem:[#allocation4] sm:$0xff]
    %v105 = vadd.f32 %v85, %v86
    %106 = vadd.xlane.f32.xlu0 %v105
    %v107 = vpop.xlane.xlu0 %106
    %v108 = vadd.f32 %v104, %v107
    %109 = vst.msk [vmem:[#allocation4] sm:$0xff] %vm94, %v108
    // Predicated region
    $region22: #{tpu_custom_call.1} parent=1 // pred_check
      %p110 = pneg %p51
    $region23: #{tpu_custom_call.1} parent=1 // pred_check_branch
      %112 = sbr.rel (%p110) target = $region25
    $region24: #{tpu_custom_call.1} parent=1 // pred_region
      %v113 = vld [vmem:[#allocation2] sm:$0xff]
      %114 = vst.msk [vmem:[%s2] sm:$0xff] %vm94, %v113
      %v115 = vld [vmem:[#allocation3] sm:$0xff]
      %117 = vrot.lane.b32.xlu0 %v115, 1
      %v118 = vpop.permute.xlu0 %117
      %vm120 = vcmask 15368
      %121 = vst.msk [vmem:[%s2] sm:$0xff] %vm120, %v118
      %v122 = vld [vmem:[#allocation4] sm:$0xff]
      %124 = vrot.lane.b32.xlu0 %v122, 2
      %v125 = vpop.permute.xlu0 %124
      %vm127 = vcmask 23568
      %128 = vst.msk [vmem:[%s2] sm:$0xff] %vm127, %v125
    $region25: #{tpu_custom_call.1} parent=1 // pred_fallthru
      _
    // Predicated region
    $region26: #{tpu_custom_call.1} parent=1 // pred_check
      _
    $region27: #{tpu_custom_call.1} parent=1 // pred_check_branch
      %130 = sbr.rel (0) target = $region29
    $region28: #{tpu_custom_call.1} parent=1 // pred_region
      _
    $region29: #{tpu_custom_call.1} parent=1 // pred_fallthru
      _
    // Predicated region
    $region30: #{tpu_custom_call.1} parent=1 // pred_check
      _
    $region31: #{tpu_custom_call.1} parent=1 // pred_check_branch
      %132 = sbr.rel (0) target = $region33
    $region32: #{tpu_custom_call.1} parent=1 // pred_region
      _
    $region33: #{tpu_custom_call.1} parent=1 // pred_fallthru
      _
    %133 = vsyncpa [#allocation6], 1
    %134 = vsyncpa [#allocation8], 1

</llo_original>
